<compile_context>
chip_gen: v6e
topology: v6e:2x2x1
jax: 0.10.0
libtpu: 0.0.40
codegen_flags: <defaults>
</compile_context>

<pallas_src>
import functools

import jax
import jax.numpy as jnp
from jax.experimental import pallas as pl
from jax.experimental.pallas import tpu as pltpu

_EPS = 1e-5  # PyTorch default eps for InstanceNorm2d / BatchNorm2d


def _in_bn_fused(y, gamma, beta, *, num_samples, seg_len, relu):
    """InstanceNorm2d (no affine) -> training-mode BatchNorm2d (affine) [-> ReLU].

    y: (C, N*S) f32, each sample's spatial extent a contiguous tile-aligned lane
    segment of length seg_len.  Uses the identity: post-IN per-(n,c) spatial mean
    is exactly 0, hence the BN batch mean is 0 and the BN batch variance reduces to
    mean_n(var / (var + eps)).  Per-element cost: one sub, one mul, one add.
    gamma/beta: (C, 1).
    """
    segs, mus, invs = [], [], []
    bvar_sum = 0.0
    for i in range(num_samples):
        sg = y[:, i * seg_len:(i + 1) * seg_len]                      # aligned slice
        mu = jnp.mean(sg, axis=-1, keepdims=True)                     # (C, 1), XLU
        var = jnp.mean(jnp.square(sg - mu), axis=-1, keepdims=True)   # (C, 1)
        inv = jax.lax.rsqrt(var + _EPS)                               # EUP slot
        bvar_sum = bvar_sum + var * inv * inv                         # var/(var+eps)
        segs.append(sg)
        mus.append(mu)
        invs.append(inv)

    bvar = bvar_sum * (1.0 / num_samples)                             # (C, 1)
    g = gamma * jax.lax.rsqrt(bvar + _EPS)                            # (C, 1)

    outs = []
    for sg, mu, inv in zip(segs, mus, invs):
        o = (sg - mu) * (inv * g) + beta
        if relu:
            o = jnp.maximum(o, 0.0)
        outs.append(o)
    # Pieces are whole (multiple-of-128) lane tiles: concat is aligned vreg placement.
    return jnp.concatenate(outs, axis=-1)


def _resnet_block_kernel(x_ref, wcat_ref, w2_ref, g1_ref, be1_ref, g2_ref, be2_ref,
                         *rest, num_samples, seg_len, cout, has_downsample):
    o_ref = rest[-1]
    x = x_ref[...].astype(jnp.float32)                        # (Cin, N*S), lane-dense

    # conv1 (+ fused downsample conv): one (Cout[*2], Cin) @ (Cin, N*S) MXU matmul.
    ycat = jnp.dot(wcat_ref[...], x, preferred_element_type=jnp.float32)
    if has_downsample:
        y1 = ycat[:cout, :]                                   # sublane-aligned split
        residual = ycat[cout:, :] + rest[0][...]              # + downsample bias
    else:
        y1 = ycat
        residual = x                                          # identity (Cin == Cout)

    # IN1 -> BN1 (fused) -> ReLU.  conv1 bias is annihilated by IN1: never computed.
    out = _in_bn_fused(y1, g1_ref[...], be1_ref[...],
                       num_samples=num_samples, seg_len=seg_len, relu=True)

    # conv2 (bias annihilated by IN2) -> IN2 -> BN2 (fused).
    out = jnp.dot(w2_ref[...], out, preferred_element_type=jnp.float32)
    out = _in_bn_fused(out, g2_ref[...], be2_ref[...],
                       num_samples=num_samples, seg_len=seg_len, relu=False)

    # Residual add + final ReLU; lane width N*S (multiple of 128) -> unmasked stores.
    o_ref[...] = jnp.maximum(out + residual, 0.0).astype(o_ref.dtype)


def resnet_block_pallas(x_nchw, params, *, downsample=True):
    """x_nchw: (N, Cin, H, W) float32.  params: dict of weights (see init_params)."""
    N, Cin, H, W = x_nchw.shape
    Cout = params["w1"].shape[0]
    S = H * W
    NS = N * S
    # TODO(synk): pad S to a multiple of 128 (and correct IN stats by the true element
    # count) for shapes like 56*56=3136 where H*W is not lane-aligned.
    assert S % 128 == 0, "H*W must be a multiple of 128 for this kernel"

    # NCHW -> (Cin, N*S): spatial+batch folded into one lane-dense free dimension.
    x_cns = x_nchw.reshape(N, Cin, S).transpose(1, 0, 2).reshape(Cin, NS)

    if downsample:
        # Fuse downsample weights into conv1: one matmul produces both outputs.
        wcat = jnp.concatenate([params["w1"], params["wd"]], axis=0)   # (2*Cout, Cin)
    else:
        assert Cin == Cout, "identity residual requires inchannel == outchannel"
        wcat = params["w1"]

    args = [x_cns, wcat, params["w2"],
            params["bn1_g"], params["bn1_b"], params["bn2_g"], params["bn2_b"]]
    if downsample:
        args.append(params["bd"])

    # Single invocation, whole (tiny) problem resident in VMEM: no grid, no pointless
    # double-buffering.  VMEM limit derived from the live-slab footprint, not fixed.
    live_slabs = 12   # x, fused conv1 output, norm temporaries, residual, output
    vmem_bytes = live_slabs * max(Cin, 2 * Cout) * NS * 4
    vmem_limit = int(min(max(2 * vmem_bytes, 2 << 20), 128 << 20))

    vmem = lambda: pl.BlockSpec(memory_space=pltpu.MemorySpace.VMEM)
    out_cns = pl.pallas_call(
        functools.partial(_resnet_block_kernel, num_samples=N, seg_len=S,
                          cout=Cout, has_downsample=downsample),
        out_shape=jax.ShapeDtypeStruct((Cout, NS), x_nchw.dtype),
        in_specs=[vmem() for _ in args],
        out_specs=vmem(),
        compiler_params=pltpu.CompilerParams(vmem_limit_bytes=vmem_limit),
    )(*args)

    # (Cout, N*S) -> NCHW.
    return out_cns.reshape(Cout, N, S).transpose(1, 0, 2).reshape(N, Cout, H, W)


def init_params(key, inchannel, outchannel, downsample=True):
    """Deterministic synthetic parameters (conv weights as (Cout, Cin), i.e. exactly
    torch Conv2d weight[:, :, 0, 0]; biases / BN params as (C, 1))."""
    ks = jax.random.split(key, 6)
    p = {
        "w1": 0.1 * jax.random.normal(ks[0], (outchannel, inchannel), jnp.float32),
        "b1": 0.1 * jax.random.normal(ks[1], (outchannel, 1), jnp.float32),
        "w2": 0.1 * jax.random.normal(ks[2], (outchannel, outchannel), jnp.float32),
        "b2": 0.1 * jax.random.normal(ks[3], (outchannel, 1), jnp.float32),
        # BatchNorm2d default init: weight=1, bias=0
        "bn1_g": jnp.ones((outchannel, 1), jnp.float32),
        "bn1_b": jnp.zeros((outchannel, 1), jnp.float32),
        "bn2_g": jnp.ones((outchannel, 1), jnp.float32),
        "bn2_b": jnp.zeros((outchannel, 1), jnp.float32),
    }
    if downsample:
        p["wd"] = 0.1 * jax.random.normal(ks[4], (outchannel, inchannel), jnp.float32)
        p["bd"] = 0.1 * jax.random.normal(ks[5], (outchannel, 1), jnp.float32)
    return p


def _reference(x_nchw, params, *, downsample=True):
    """Pure-JAX reference with the module's exact (unfused) semantics, incl. b1/b2."""
    def conv1x1(x, w, b):                       # x: (N,C,H,W), w: (Cout,Cin)
        return jnp.einsum("oc,nchw->nohw", w, x) + b.reshape(1, -1, 1, 1)

    def inorm(x):
        mu = jnp.mean(x, axis=(2, 3), keepdims=True)
        var = jnp.mean((x - mu) ** 2, axis=(2, 3), keepdims=True)
        return (x - mu) * jax.lax.rsqrt(var + _EPS)

    def bnorm(x, g, b):
        mu = jnp.mean(x, axis=(0, 2, 3), keepdims=True)
        var = jnp.mean((x - mu) ** 2, axis=(0, 2, 3), keepdims=True)
        return (x - mu) * jax.lax.rsqrt(var + _EPS) * g.reshape(1, -1, 1, 1) \
            + b.reshape(1, -1, 1, 1)

    out = conv1x1(x_nchw, params["w1"], params["b1"])
    out = bnorm(inorm(out), params["bn1_g"], params["bn1_b"])
    out = jnp.maximum(out, 0.0)
    out = conv1x1(out, params["w2"], params["b2"])
    out = bnorm(inorm(out), params["bn2_g"], params["bn2_b"])
    if downsample:
        residual = conv1x1(x_nchw, params["wd"], params["bd"])
    else:
        residual = x_nchw
    return jnp.maximum(out + residual, 0.0)


if __name__ == "__main__":
    key = jax.random.PRNGKey(0)
    k_x, k_p, k_p2 = jax.random.split(key, 3)

    # --- downsample variant (Cin != Cout) ---
    N, Cin, H, W = 2, 4, 16, 16
    Cout = 8
    x = jax.random.normal(k_x, (N, Cin, H, W), jnp.float32)
    params = init_params(k_p, Cin, Cout, downsample=True)

    out = jax.block_until_ready(resnet_block_pallas(x, params, downsample=True))
    ref = _reference(x, params, downsample=True)
    assert out.shape == (N, Cout, H, W)
    assert jnp.allclose(out, ref, rtol=1e-4, atol=1e-4), "mismatch (downsample=True)"

    # --- identity-residual variant (downsample=None in the PyTorch module) ---
    x2 = jax.random.normal(k_x, (N, Cout, H, W), jnp.float32)
    params2 = init_params(k_p2, Cout, Cout, downsample=False)
    out2 = jax.block_until_ready(resnet_block_pallas(x2, params2, downsample=False))
    ref2 = _reference(x2, params2, downsample=False)
    assert out2.shape == (N, Cout, H, W)
    assert jnp.allclose(out2, ref2, rtol=1e-4, atol=1e-4), "mismatch (downsample=False)"

    print("KERNEL_OK")
</pallas_src>

<mosaic_0001>
module attributes {stable_mosaic.version = 11 : i64} {
  func.func @_resnet_block_kernel(%arg0: memref<4x512xf32, #tpu.memory_space<vmem>>, %arg1: memref<16x4xf32, #tpu.memory_space<vmem>>, %arg2: memref<8x8xf32, #tpu.memory_space<vmem>>, %arg3: memref<8x1xf32, #tpu.memory_space<vmem>>, %arg4: memref<8x1xf32, #tpu.memory_space<vmem>>, %arg5: memref<8x1xf32, #tpu.memory_space<vmem>>, %arg6: memref<8x1xf32, #tpu.memory_space<vmem>>, %arg7: memref<8x1xf32, #tpu.memory_space<vmem>>, %arg8: memref<8x512xf32, #tpu.memory_space<vmem>>) attributes {dimension_semantics = [], scalar_prefetch = 0 : i64, scratch_operands = 0 : i64, tpu.core_type = #tpu.core_type<tc>} {
    %c0 = arith.constant 0 : index
    %c0_0 = arith.constant 0 : index
    %0 = vector.load %arg0[%c0, %c0_0] : memref<4x512xf32, #tpu.memory_space<vmem>>, vector<4x512xf32>
    %c0_1 = arith.constant 0 : index
    %c0_2 = arith.constant 0 : index
    %1 = vector.load %arg1[%c0_1, %c0_2] : memref<16x4xf32, #tpu.memory_space<vmem>>, vector<16x4xf32>
    %cst = arith.constant dense<0.000000e+00> : vector<16x512xf32>
    %2 = tpu.matmul %1, %0, %cst {dimension_numbers = #tpu.dot_dimension_numbers<[1], [0], [0], [1], [0, 0, 1, 1], [], []>} : vector<16x4xf32>, vector<4x512xf32>, vector<16x512xf32> -> vector<16x512xf32>
    %3 = vector.extract_strided_slice %2 {offsets = [0, 0], sizes = [8, 512], strides = [1, 1]} : vector<16x512xf32> to vector<8x512xf32>
    %4 = vector.extract_strided_slice %2 {offsets = [8, 0], sizes = [8, 512], strides = [1, 1]} : vector<16x512xf32> to vector<8x512xf32>
    %c0_3 = arith.constant 0 : index
    %c0_4 = arith.constant 0 : index
    %5 = vector.load %arg7[%c0_3, %c0_4] : memref<8x1xf32, #tpu.memory_space<vmem>>, vector<8x1xf32>
    %6 = vector.broadcast %5 : vector<8x1xf32> to vector<8x512xf32>
    %7 = arith.addf %4, %6 : vector<8x512xf32>
    %c0_5 = arith.constant 0 : index
    %c0_6 = arith.constant 0 : index
    %8 = vector.load %arg3[%c0_5, %c0_6] : memref<8x1xf32, #tpu.memory_space<vmem>>, vector<8x1xf32>
    %c0_7 = arith.constant 0 : index
    %c0_8 = arith.constant 0 : index
    %9 = vector.load %arg4[%c0_7, %c0_8] : memref<8x1xf32, #tpu.memory_space<vmem>>, vector<8x1xf32>
    %10 = vector.extract_strided_slice %3 {offsets = [0, 0], sizes = [8, 256], strides = [1, 1]} : vector<8x512xf32> to vector<8x256xf32>
    %cst_9 = arith.constant dense<0.000000e+00> : vector<8xf32>
    %11 = vector.multi_reduction <add>, %10, %cst_9 [1] : vector<8x256xf32> to vector<8xf32>
    %12 = vector.shape_cast %11 : vector<8xf32> to vector<8x1xf32>
    %cst_10 = arith.constant 2.560000e+02 : f32
    %13 = vector.broadcast %cst_10 : f32 to vector<8x1xf32>
    %14 = arith.divf %12, %13 : vector<8x1xf32>
    %15 = vector.broadcast %14 : vector<8x1xf32> to vector<8x256xf32>
    %16 = arith.subf %10, %15 : vector<8x256xf32>
    %17 = arith.mulf %16, %16 : vector<8x256xf32>
    %cst_11 = arith.constant dense<0.000000e+00> : vector<8xf32>
    %18 = vector.multi_reduction <add>, %17, %cst_11 [1] : vector<8x256xf32> to vector<8xf32>
    %19 = vector.shape_cast %18 : vector<8xf32> to vector<8x1xf32>
    %cst_12 = arith.constant 2.560000e+02 : f32
    %20 = vector.broadcast %cst_12 : f32 to vector<8x1xf32>
    %21 = arith.divf %19, %20 : vector<8x1xf32>
    %cst_13 = arith.constant 9.99999974E-6 : f32
    %22 = vector.broadcast %cst_13 : f32 to vector<8x1xf32>
    %23 = arith.addf %21, %22 : vector<8x1xf32>
    %24 = math.rsqrt %23 : vector<8x1xf32>
    %25 = arith.mulf %21, %24 : vector<8x1xf32>
    %26 = arith.mulf %25, %24 : vector<8x1xf32>
    %cst_14 = arith.constant 0.000000e+00 : f32
    %27 = vector.broadcast %cst_14 : f32 to vector<8x1xf32>
    %28 = arith.addf %27, %26 : vector<8x1xf32>
    %29 = vector.extract_strided_slice %3 {offsets = [0, 256], sizes = [8, 256], strides = [1, 1]} : vector<8x512xf32> to vector<8x256xf32>
    %cst_15 = arith.constant dense<0.000000e+00> : vector<8xf32>
    %30 = vector.multi_reduction <add>, %29, %cst_15 [1] : vector<8x256xf32> to vector<8xf32>
    %31 = vector.shape_cast %30 : vector<8xf32> to vector<8x1xf32>
    %cst_16 = arith.constant 2.560000e+02 : f32
    %32 = vector.broadcast %cst_16 : f32 to vector<8x1xf32>
    %33 = arith.divf %31, %32 : vector<8x1xf32>
    %34 = vector.broadcast %33 : vector<8x1xf32> to vector<8x256xf32>
    %35 = arith.subf %29, %34 : vector<8x256xf32>
    %36 = arith.mulf %35, %35 : vector<8x256xf32>
    %cst_17 = arith.constant dense<0.000000e+00> : vector<8xf32>
    %37 = vector.multi_reduction <add>, %36, %cst_17 [1] : vector<8x256xf32> to vector<8xf32>
    %38 = vector.shape_cast %37 : vector<8xf32> to vector<8x1xf32>
    %cst_18 = arith.constant 2.560000e+02 : f32
    %39 = vector.broadcast %cst_18 : f32 to vector<8x1xf32>
    %40 = arith.divf %38, %39 : vector<8x1xf32>
    %cst_19 = arith.constant 9.99999974E-6 : f32
    %41 = vector.broadcast %cst_19 : f32 to vector<8x1xf32>
    %42 = arith.addf %40, %41 : vector<8x1xf32>
    %43 = math.rsqrt %42 : vector<8x1xf32>
    %44 = arith.mulf %40, %43 : vector<8x1xf32>
    %45 = arith.mulf %44, %43 : vector<8x1xf32>
    %46 = arith.addf %28, %45 : vector<8x1xf32>
    %cst_20 = arith.constant 5.000000e-01 : f32
    %47 = vector.broadcast %cst_20 : f32 to vector<8x1xf32>
    %48 = arith.mulf %46, %47 : vector<8x1xf32>
    %cst_21 = arith.constant 9.99999974E-6 : f32
    %49 = vector.broadcast %cst_21 : f32 to vector<8x1xf32>
    %50 = arith.addf %48, %49 : vector<8x1xf32>
    %51 = math.rsqrt %50 : vector<8x1xf32>
    %52 = arith.mulf %8, %51 : vector<8x1xf32>
    %53 = vector.broadcast %14 : vector<8x1xf32> to vector<8x256xf32>
    %54 = arith.subf %10, %53 : vector<8x256xf32>
    %55 = arith.mulf %24, %52 : vector<8x1xf32>
    %56 = vector.broadcast %55 : vector<8x1xf32> to vector<8x256xf32>
    %57 = arith.mulf %54, %56 : vector<8x256xf32>
    %58 = vector.broadcast %9 : vector<8x1xf32> to vector<8x256xf32>
    %59 = arith.addf %57, %58 : vector<8x256xf32>
    %cst_22 = arith.constant 0.000000e+00 : f32
    %60 = vector.broadcast %cst_22 : f32 to vector<8x256xf32>
    %61 = arith.maximumf %59, %60 : vector<8x256xf32>
    %62 = vector.broadcast %33 : vector<8x1xf32> to vector<8x256xf32>
    %63 = arith.subf %29, %62 : vector<8x256xf32>
    %64 = arith.mulf %43, %52 : vector<8x1xf32>
    %65 = vector.broadcast %64 : vector<8x1xf32> to vector<8x256xf32>
    %66 = arith.mulf %63, %65 : vector<8x256xf32>
    %67 = vector.broadcast %9 : vector<8x1xf32> to vector<8x256xf32>
    %68 = arith.addf %66, %67 : vector<8x256xf32>
    %cst_23 = arith.constant 0.000000e+00 : f32
    %69 = vector.broadcast %cst_23 : f32 to vector<8x256xf32>
    %70 = arith.maximumf %68, %69 : vector<8x256xf32>
    %71 = tpu.concatenate %61, %70 in 1 : vector<8x256xf32>, vector<8x256xf32> -> vector<8x512xf32>
    %c0_24 = arith.constant 0 : index
    %c0_25 = arith.constant 0 : index
    %72 = vector.load %arg2[%c0_24, %c0_25] : memref<8x8xf32, #tpu.memory_space<vmem>>, vector<8x8xf32>
    %cst_26 = arith.constant dense<0.000000e+00> : vector<8x512xf32>
    %73 = tpu.matmul %72, %71, %cst_26 {dimension_numbers = #tpu.dot_dimension_numbers<[1], [0], [0], [1], [0, 0, 1, 1], [], []>} : vector<8x8xf32>, vector<8x512xf32>, vector<8x512xf32> -> vector<8x512xf32>
    %c0_27 = arith.constant 0 : index
    %c0_28 = arith.constant 0 : index
    %74 = vector.load %arg5[%c0_27, %c0_28] : memref<8x1xf32, #tpu.memory_space<vmem>>, vector<8x1xf32>
    %c0_29 = arith.constant 0 : index
    %c0_30 = arith.constant 0 : index
    %75 = vector.load %arg6[%c0_29, %c0_30] : memref<8x1xf32, #tpu.memory_space<vmem>>, vector<8x1xf32>
    %76 = vector.extract_strided_slice %73 {offsets = [0, 0], sizes = [8, 256], strides = [1, 1]} : vector<8x512xf32> to vector<8x256xf32>
    %cst_31 = arith.constant dense<0.000000e+00> : vector<8xf32>
    %77 = vector.multi_reduction <add>, %76, %cst_31 [1] : vector<8x256xf32> to vector<8xf32>
    %78 = vector.shape_cast %77 : vector<8xf32> to vector<8x1xf32>
    %cst_32 = arith.constant 2.560000e+02 : f32
    %79 = vector.broadcast %cst_32 : f32 to vector<8x1xf32>
    %80 = arith.divf %78, %79 : vector<8x1xf32>
    %81 = vector.broadcast %80 : vector<8x1xf32> to vector<8x256xf32>
    %82 = arith.subf %76, %81 : vector<8x256xf32>
    %83 = arith.mulf %82, %82 : vector<8x256xf32>
    %cst_33 = arith.constant dense<0.000000e+00> : vector<8xf32>
    %84 = vector.multi_reduction <add>, %83, %cst_33 [1] : vector<8x256xf32> to vector<8xf32>
    %85 = vector.shape_cast %84 : vector<8xf32> to vector<8x1xf32>
    %cst_34 = arith.constant 2.560000e+02 : f32
    %86 = vector.broadcast %cst_34 : f32 to vector<8x1xf32>
    %87 = arith.divf %85, %86 : vector<8x1xf32>
    %cst_35 = arith.constant 9.99999974E-6 : f32
    %88 = vector.broadcast %cst_35 : f32 to vector<8x1xf32>
    %89 = arith.addf %87, %88 : vector<8x1xf32>
    %90 = math.rsqrt %89 : vector<8x1xf32>
    %91 = arith.mulf %87, %90 : vector<8x1xf32>
    %92 = arith.mulf %91, %90 : vector<8x1xf32>
    %cst_36 = arith.constant 0.000000e+00 : f32
    %93 = vector.broadcast %cst_36 : f32 to vector<8x1xf32>
    %94 = arith.addf %93, %92 : vector<8x1xf32>
    %95 = vector.extract_strided_slice %73 {offsets = [0, 256], sizes = [8, 256], strides = [1, 1]} : vector<8x512xf32> to vector<8x256xf32>
    %cst_37 = arith.constant dense<0.000000e+00> : vector<8xf32>
    %96 = vector.multi_reduction <add>, %95, %cst_37 [1] : vector<8x256xf32> to vector<8xf32>
    %97 = vector.shape_cast %96 : vector<8xf32> to vector<8x1xf32>
    %cst_38 = arith.constant 2.560000e+02 : f32
    %98 = vector.broadcast %cst_38 : f32 to vector<8x1xf32>
    %99 = arith.divf %97, %98 : vector<8x1xf32>
    %100 = vector.broadcast %99 : vector<8x1xf32> to vector<8x256xf32>
    %101 = arith.subf %95, %100 : vector<8x256xf32>
    %102 = arith.mulf %101, %101 : vector<8x256xf32>
    %cst_39 = arith.constant dense<0.000000e+00> : vector<8xf32>
    %103 = vector.multi_reduction <add>, %102, %cst_39 [1] : vector<8x256xf32> to vector<8xf32>
    %104 = vector.shape_cast %103 : vector<8xf32> to vector<8x1xf32>
    %cst_40 = arith.constant 2.560000e+02 : f32
    %105 = vector.broadcast %cst_40 : f32 to vector<8x1xf32>
    %106 = arith.divf %104, %105 : vector<8x1xf32>
    %cst_41 = arith.constant 9.99999974E-6 : f32
    %107 = vector.broadcast %cst_41 : f32 to vector<8x1xf32>
    %108 = arith.addf %106, %107 : vector<8x1xf32>
    %109 = math.rsqrt %108 : vector<8x1xf32>
    %110 = arith.mulf %106, %109 : vector<8x1xf32>
    %111 = arith.mulf %110, %109 : vector<8x1xf32>
    %112 = arith.addf %94, %111 : vector<8x1xf32>
    %cst_42 = arith.constant 5.000000e-01 : f32
    %113 = vector.broadcast %cst_42 : f32 to vector<8x1xf32>
    %114 = arith.mulf %112, %113 : vector<8x1xf32>
    %cst_43 = arith.constant 9.99999974E-6 : f32
    %115 = vector.broadcast %cst_43 : f32 to vector<8x1xf32>
    %116 = arith.addf %114, %115 : vector<8x1xf32>
    %117 = math.rsqrt %116 : vector<8x1xf32>
    %118 = arith.mulf %74, %117 : vector<8x1xf32>
    %119 = vector.broadcast %80 : vector<8x1xf32> to vector<8x256xf32>
    %120 = arith.subf %76, %119 : vector<8x256xf32>
    %121 = arith.mulf %90, %118 : vector<8x1xf32>
    %122 = vector.broadcast %121 : vector<8x1xf32> to vector<8x256xf32>
    %123 = arith.mulf %120, %122 : vector<8x256xf32>
    %124 = vector.broadcast %75 : vector<8x1xf32> to vector<8x256xf32>
    %125 = arith.addf %123, %124 : vector<8x256xf32>
    %126 = vector.broadcast %99 : vector<8x1xf32> to vector<8x256xf32>
    %127 = arith.subf %95, %126 : vector<8x256xf32>
    %128 = arith.mulf %109, %118 : vector<8x1xf32>
    %129 = vector.broadcast %128 : vector<8x1xf32> to vector<8x256xf32>
    %130 = arith.mulf %127, %129 : vector<8x256xf32>
    %131 = vector.broadcast %75 : vector<8x1xf32> to vector<8x256xf32>
    %132 = arith.addf %130, %131 : vector<8x256xf32>
    %133 = tpu.concatenate %125, %132 in 1 : vector<8x256xf32>, vector<8x256xf32> -> vector<8x512xf32>
    %134 = arith.addf %133, %7 : vector<8x512xf32>
    %cst_44 = arith.constant 0.000000e+00 : f32
    %135 = vector.broadcast %cst_44 : f32 to vector<8x512xf32>
    %136 = arith.maximumf %134, %135 : vector<8x512xf32>
    %c0_45 = arith.constant 0 : index
    %c0_46 = arith.constant 0 : index
    %137 = vector.load %arg8[%c0_45, %c0_46] : memref<8x512xf32, #tpu.memory_space<vmem>>, vector<8x512xf32>
    tpu.vector_store %arg8[%c0_45, %c0_46], %136 {strides = array<i32>} : memref<8x512xf32, #tpu.memory_space<vmem>>, vector<8x512xf32>,
    return
  }
}

</mosaic_0001>

<llo_original>
// kernel: tpu_custom_call.1
$region0: #{tpu_custom_call.1}
  #allocation0 [shape = 'u32[]', space=smem, size = 0x4, offset = 0x4, fixed_abs, tag = 'smem constant byte address 0x4 - core index']
  #allocation1 [shape = 'u32[144,128]{1,0:T(1,128)}', space=vmem, size = 0x12000, scoped, tag = 'internal scratch']
  %s0 = inlined_call_operand.vmem [shape: f32[4,512], index: 0, kind: input, shape index: {}]
  %s1 = inlined_call_operand.vmem [shape: f32[16,4], index: 1, kind: input, shape index: {}]
  %s2 = inlined_call_operand.vmem [shape: f32[8,8], index: 2, kind: input, shape index: {}]
  %s3 = inlined_call_operand.vmem [shape: f32[8,1], index: 3, kind: input, shape index: {}]
  %s4 = inlined_call_operand.vmem [shape: f32[8,1], index: 4, kind: input, shape index: {}]
  %s5 = inlined_call_operand.vmem [shape: f32[8,1], index: 5, kind: input, shape index: {}]
  %s6 = inlined_call_operand.vmem [shape: f32[8,1], index: 6, kind: input, shape index: {}]
  %s7 = inlined_call_operand.vmem [shape: f32[8,1], index: 7, kind: input, shape index: {}]
  %s8 = inlined_call_operand.hbm [shape: f32[8,512], index: 8, kind: output, shape index: {}]
  %s9 = sld [smem:[#allocation0]]
  $region42: #{tpu_custom_call.1} parent=0
    _
  %s11 = ssub.s32 1, %s9
  %s12 = scalar_select 0, %s11, %s9
  $region1: #{tpu_custom_call.1} parent=0
    #allocation2 [shape = 'u8[16384]{0}', space=vmem, size = 0x4000, scoped, tag = 'output window, operand 0, single buffered']
    #allocation3 [shape = 's32[1]{0}', space=sflag, size = 0x4, scoped, tag = 'scoped memory for tpu_custom_call.1']
    %13 = vsyncpa [#allocation3], 0
    // Predicated region
    $region2: #{tpu_custom_call.1} parent=1 // pred_check
      _
    $region3: #{tpu_custom_call.1} parent=1 // pred_check_branch
      %15 = sbr.rel (0) target = $region5
    $region4: #{tpu_custom_call.1} parent=1 // pred_region
      _
    $region5: #{tpu_custom_call.1} parent=1 // pred_fallthru
      _
    // Predicated region
    $region6: #{tpu_custom_call.1} parent=1 // pred_check
      _
    $region7: #{tpu_custom_call.1} parent=1 // pred_check_branch
      %17 = sbr.rel (0) target = $region9
    $region8: #{tpu_custom_call.1} parent=1 // pred_region
      _
    $region9: #{tpu_custom_call.1} parent=1 // pred_fallthru
      _
    // Predicated region
    $region10: #{tpu_custom_call.1} parent=1 // pred_check
      _
    $region11: #{tpu_custom_call.1} parent=1 // pred_check_branch
      %19 = sbr.rel (0) target = $region13
    $region12: #{tpu_custom_call.1} parent=1 // pred_region
      _
    $region13: #{tpu_custom_call.1} parent=1 // pred_fallthru
      _
    // Predicated region
    $region14: #{tpu_custom_call.1} parent=1 // pred_check
      _
    $region15: #{tpu_custom_call.1} parent=1 // pred_check_branch
      %21 = sbr.rel (0) target = $region17
    $region16: #{tpu_custom_call.1} parent=1 // pred_region
      _
    $region17: #{tpu_custom_call.1} parent=1 // pred_fallthru
      _
    // Predicated region
    $region18: #{tpu_custom_call.1} parent=1 // pred_check
      _
    $region19: #{tpu_custom_call.1} parent=1 // pred_check_branch
      %23 = sbr.rel (0) target = $region21
    $region20: #{tpu_custom_call.1} parent=1 // pred_region
      _
    $region21: #{tpu_custom_call.1} parent=1 // pred_fallthru
      _
    // Predicated region
    $region22: #{tpu_custom_call.1} parent=1 // pred_check
      _
    $region23: #{tpu_custom_call.1} parent=1 // pred_check_branch
      %25 = sbr.rel (0) target = $region25
    $region24: #{tpu_custom_call.1} parent=1 // pred_region
      _
    $region25: #{tpu_custom_call.1} parent=1 // pred_fallthru
      _
    // Predicated region
    $region26: #{tpu_custom_call.1} parent=1 // pred_check
      _
    $region27: #{tpu_custom_call.1} parent=1 // pred_check_branch
      %27 = sbr.rel (0) target = $region29
    $region28: #{tpu_custom_call.1} parent=1 // pred_region
      _
    $region29: #{tpu_custom_call.1} parent=1 // pred_fallthru
      _
    // Predicated region
    $region30: #{tpu_custom_call.1} parent=1 // pred_check
      _
    $region31: #{tpu_custom_call.1} parent=1 // pred_check_branch
      %29 = sbr.rel (0) target = $region33
    $region32: #{tpu_custom_call.1} parent=1 // pred_region
      _
    $region33: #{tpu_custom_call.1} parent=1 // pred_fallthru
      _
    %v30 = vld [vmem:[%s0] sm:$0xff]
    %v31 = vld [vmem:[%s0 + $0x8] sm:$0xff]
    %v32 = vld [vmem:[%s1] sm:$0xff]
    %v33 = vld [vmem:[%s1 + $0x8] sm:$0xff]
    %v36 = vcombine.high %v30, %v30
    %v37 = vcombine.high %v31, %v31
    %vm38 = vcmask 31744
    %v40 = vsel %vm38, %v32, 0
    %v43 = vsel %vm38, %v33, 0
    %vm45 = vcmask 1043456
    %v46 = vsel %vm45, %v30, 0
    %v48 = vsel %vm45, %v36, 0
    %v50 = vsel %vm45, %v31, 0
    %v52 = vsel %vm45, %v37, 0
    %54 = vmatprep.subr.mxu0 0.0
    %55 = vmatpush1.msra.mxu0 0.0
    %56 = vmatprep.subr.mxu0 0.0
    %57 = vmatpush1.msra.mxu0 0.0
    %58 = vmatprep.subr.mxu0 0.0
    %59 = vmatpush1.msra.mxu0 0.0
    %60 = vmatprep.subr.mxu0 0.0
    %61 = vmatpush1.msra.mxu0 0.0
    %62 = vmatprep.subr.mxu0 0.0
    %63 = vmatpush1.msra.mxu0 0.0
    %64 = vmatprep.subr.mxu0 0.0
    %65 = vmatpush1.msra.mxu0 0.0
    %66 = vmatprep.subr.mxu0 0.0
    %67 = vmatpush1.msra.mxu0 0.0
    %68 = vmatprep.subr.mxu0 0.0
    %69 = vmatpush1.msra.mxu0 0.0
    %70 = vmatprep.subr.mxu0 0.0
    %71 = vmatpush1.msra.mxu0 0.0
    %72 = vmatprep.subr.mxu0 0.0
    %73 = vmatpush1.msra.mxu0 0.0
    %74 = vmatprep.subr.mxu0 0.0
    %75 = vmatpush1.msra.mxu0 0.0
    %76 = vmatprep.subr.mxu0 0.0
    %77 = vmatpush1.msra.mxu0 0.0
    %78 = vmatprep.subr.mxu0 0.0
    %79 = vmatpush1.msra.mxu0 0.0
    %80 = vmatprep.subr.mxu0 0.0
    %81 = vmatpush1.msra.mxu0 0.0
    %82 = vmatprep.subr.mxu0 0.0
    %83 = vmatpush1.msra.mxu0 0.0
    %84 = vmatprep.subr.mxu0 %v48
    %85 = vmatpush1.msra.mxu0 %v46
    %86 = vmatprep.subr.mxu0 0.0
    %87 = vmatpush2.msra.mxu0 0.0
    %88 = vmatprep.subr.mxu0 0.0
    %89 = vmatpush2.msra.mxu0 0.0
    %90 = vmatprep.subr.mxu0 0.0
    %91 = vmatpush2.msra.mxu0 0.0
    %92 = vmatprep.subr.mxu0 0.0
    %93 = vmatpush2.msra.mxu0 0.0
    %94 = vmatprep.subr.mxu0 0.0
    %95 = vmatpush2.msra.mxu0 0.0
    %96 = vmatprep.subr.mxu0 0.0
    %97 = vmatpush2.msra.mxu0 0.0
    %98 = vmatprep.subr.mxu0 0.0
    %99 = vmatpush2.msra.mxu0 0.0
    %100 = vmatprep.subr.mxu0 0.0
    %101 = vmatpush2.msra.mxu0 0.0
    %102 = vmatprep.subr.mxu0 0.0
    %103 = vmatpush2.msra.mxu0 0.0
    %104 = vmatprep.subr.mxu0 0.0
    %105 = vmatpush2.msra.mxu0 0.0
    %106 = vmatprep.subr.mxu0 0.0
    %107 = vmatpush2.msra.mxu0 0.0
    %108 = vmatprep.subr.mxu0 0.0
    %109 = vmatpush2.msra.mxu0 0.0
    %110 = vmatprep.subr.mxu0 0.0
    %111 = vmatpush2.msra.mxu0 0.0
    %112 = vmatprep.subr.mxu0 0.0
    %113 = vmatpush2.msra.mxu0 0.0
    %114 = vmatprep.subr.mxu0 0.0
    %115 = vmatpush2.msra.mxu0 0.0
    %116 = vmatprep.subr.mxu0 0.0
    %117 = vmatpush2.msra.mxu0 0.0
    %118 = vmatprep.mubr.f32.mxu0 0.0
    %119 = vmatmul.mubr.f32.gmra.mxu0 %v40
    %v120 = vpop.f32.mrf.mxu0
    %v121 = vadd.f32 0.0, %v120
    %v122 = vpop.f32.mrf.mxu0
    %v123 = vadd.f32 0.0, %v122
    %124 = vmatprep.mubr.f32.mxu0 0.0
    %125 = vmatmul.mubr.f32.gmra.mxu0 %v43
    %v126 = vpop.f32.mrf.mxu0
    %v127 = vadd.f32 0.0, %v126
    %v128 = vpop.f32.mrf.mxu0
    %v129 = vadd.f32 0.0, %v128
    %130 = vdwg.mxu0
    %131 = vmatprep.subr.mxu0 0.0
    %132 = vmatpush1.msra.mxu0 0.0
    %133 = vmatprep.subr.mxu0 0.0
    %134 = vmatpush1.msra.mxu0 0.0
    %135 = vmatprep.subr.mxu0 0.0
    %136 = vmatpush1.msra.mxu0 0.0
    %137 = vmatprep.subr.mxu0 0.0
    %138 = vmatpush1.msra.mxu0 0.0
    %139 = vmatprep.subr.mxu0 0.0
    %140 = vmatpush1.msra.mxu0 0.0
    %141 = vmatprep.subr.mxu0 0.0
    %142 = vmatpush1.msra.mxu0 0.0
    %143 = vmatprep.subr.mxu0 0.0
    %144 = vmatpush1.msra.mxu0 0.0
    %145 = vmatprep.subr.mxu0 0.0
    %146 = vmatpush1.msra.mxu0 0.0
    %147 = vmatprep.subr.mxu0 0.0
    %148 = vmatpush1.msra.mxu0 0.0
    %149 = vmatprep.subr.mxu0 0.0
    %150 = vmatpush1.msra.mxu0 0.0
    %151 = vmatprep.subr.mxu0 0.0
    %152 = vmatpush1.msra.mxu0 0.0
    %153 = vmatprep.subr.mxu0 0.0
    %154 = vmatpush1.msra.mxu0 0.0
    %155 = vmatprep.subr.mxu0 0.0
    %156 = vmatpush1.msra.mxu0 0.0
    %157 = vmatprep.subr.mxu0 0.0
    %158 = vmatpush1.msra.mxu0 0.0
    %159 = vmatprep.subr.mxu0 0.0
    %160 = vmatpush1.msra.mxu0 0.0
    %161 = vmatprep.subr.mxu0 %v52
    %162 = vmatpush1.msra.mxu0 %v50
    %163 = vmatprep.subr.mxu0 0.0
    %164 = vmatpush2.msra.mxu0 0.0
    %165 = vmatprep.subr.mxu0 0.0
    %166 = vmatpush2.msra.mxu0 0.0
    %167 = vmatprep.subr.mxu0 0.0
    %168 = vmatpush2.msra.mxu0 0.0
    %169 = vmatprep.subr.mxu0 0.0
    %170 = vmatpush2.msra.mxu0 0.0
    %171 = vmatprep.subr.mxu0 0.0
    %172 = vmatpush2.msra.mxu0 0.0
    %173 = vmatprep.subr.mxu0 0.0
    %174 = vmatpush2.msra.mxu0 0.0
    %175 = vmatprep.subr.mxu0 0.0
    %176 = vmatpush2.msra.mxu0 0.0
    %177 = vmatprep.subr.mxu0 0.0
    %178 = vmatpush2.msra.mxu0 0.0
    %179 = vmatprep.subr.mxu0 0.0
    %180 = vmatpush2.msra.mxu0 0.0
    %181 = vmatprep.subr.mxu0 0.0
    %182 = vmatpush2.msra.mxu0 0.0
    %183 = vmatprep.subr.mxu0 0.0
    %184 = vmatpush2.msra.mxu0 0.0
    %185 = vmatprep.subr.mxu0 0.0
    %186 = vmatpush2.msra.mxu0 0.0
    %187 = vmatprep.subr.mxu0 0.0
    %188 = vmatpush2.msra.mxu0 0.0
    %189 = vmatprep.subr.mxu0 0.0
    %190 = vmatpush2.msra.mxu0 0.0
    %191 = vmatprep.subr.mxu0 0.0
    %192 = vmatpush2.msra.mxu0 0.0
    %193 = vmatprep.subr.mxu0 0.0
    %194 = vmatpush2.msra.mxu0 0.0
    %195 = vmatprep.mubr.f32.mxu0 0.0
    %196 = vmatmul.mubr.f32.gmra.mxu0 %v40
    %v197 = vpop.f32.mrf.mxu0
    %v198 = vadd.f32 0.0, %v197
    %v199 = vpop.f32.mrf.mxu0
    %v200 = vadd.f32 0.0, %v199
    %201 = vmatprep.mubr.f32.mxu0 0.0
    %202 = vmatmul.mubr.f32.gmra.mxu0 %v43
    %v203 = vpop.f32.mrf.mxu0
    %v204 = vadd.f32 0.0, %v203
    %v205 = vpop.f32.mrf.mxu0
    %v206 = vadd.f32 0.0, %v205
    %207 = vdwg.mxu0
    %v208 = vld [vmem:[%s7] sm:$0xff]
    %210 = vset.pattern.permute.xlu0 0
    %211 = vperm.xlu0 %210, %v208
    %v212 = vpop.permute.xlu0 %211
    %v214 = vadd.f32 %v127, %v212
    %v215 = vadd.f32 %v129, %v212
    %v216 = vadd.f32 %v204, %v212
    %v217 = vadd.f32 %v206, %v212
    %v218 = vld [vmem:[%s3] sm:$0xff]
    %v219 = vld [vmem:[%s4] sm:$0xff]
    %v220 = vadd.f32 %v121, %v123
    %221 = vadd.xlane.f32.xlu0 %v220
    %v222 = vpop.xlane.xlu0 %221
    %v223 = vrcp.pop 256.0
    %v224 = vmul.f32 %v222, %v223
    %v225 = vsub.f32 %v121, %v224
    %v226 = vsub.f32 %v123, %v224
    %v227 = vmul.f32 %v225, %v225
    %v228 = vmul.f32 %v226, %v226
    %v229 = vadd.f32 %v227, %v228
    %230 = vadd.xlane.f32.xlu0 %v229
    %v231 = vpop.xlane.xlu0 %230
    %v232 = vmul.f32 %v231, %v223
    %v233 = vadd.f32 %v232, 1e-05
    %v234 = vrsqrt.pop %v233
    %v235 = vmul.f32 %v232, %v234
    %v236 = vmul.f32 %v235, %v234
    %v237 = vadd.f32 %v236, 0.0
    %v238 = vadd.f32 %v198, %v200
    %239 = vadd.xlane.f32.xlu0 %v238
    %v240 = vpop.xlane.xlu0 %239
    %v241 = vmul.f32 %v240, %v223
    %v242 = vsub.f32 %v198, %v241
    %v243 = vsub.f32 %v200, %v241
    %v244 = vmul.f32 %v242, %v242
    %v245 = vmul.f32 %v243, %v243
    %v246 = vadd.f32 %v244, %v245
    %247 = vadd.xlane.f32.xlu0 %v246
    %v248 = vpop.xlane.xlu0 %247
    %v249 = vmul.f32 %v248, %v223
    %v250 = vadd.f32 %v249, 1e-05
    %v251 = vrsqrt.pop %v250
    %v252 = vmul.f32 %v249, %v251
    %v253 = vmul.f32 %v252, %v251
    %v254 = vadd.f32 %v237, %v253
    %v255 = vmul.f32 %v254, 0.5
    %v256 = vadd.f32 %v255, 1e-05
    %v257 = vrsqrt.pop %v256
    %v258 = vmul.f32 %v218, %v257
    %v259 = vmul.f32 %v234, %v258
    %261 = vset.pattern.permute.xlu0 0
    %262 = vperm.xlu0 %261, %v259
    %v263 = vpop.permute.xlu0 %262
    %v265 = vmul.f32 %v225, %v263
    %v266 = vmul.f32 %v226, %v263
    %268 = vset.pattern.permute.xlu0 0
    %269 = vperm.xlu0 %268, %v219
    %v270 = vpop.permute.xlu0 %269
    %v272 = vadd.f32 %v265, %v270
    %v273 = vadd.f32 %v266, %v270
    %v274 = vmax.f32 %v272, 0.0
    %v275 = vmax.f32 %v273, 0.0
    %v276 = vmul.f32 %v251, %v258
    %278 = vset.pattern.permute.xlu0 0
    %279 = vperm.xlu0 %278, %v276
    %v280 = vpop.permute.xlu0 %279
    %v282 = vmul.f32 %v242, %v280
    %v283 = vmul.f32 %v243, %v280
    %v284 = vadd.f32 %v282, %v270
    %v285 = vadd.f32 %v283, %v270
    %v286 = vmax.f32 %v284, 0.0
    %v287 = vmax.f32 %v285, 0.0
    %v288 = vld [vmem:[%s2] sm:$0xff]
    %vm289 = vcmask 64512
    %v291 = vsel %vm289, %v288, 0
    %293 = vmatprep.subr.mxu0 0.0
    %294 = vmatpush1.msra.mxu0 0.0
    %295 = vmatprep.subr.mxu0 0.0
    %296 = vmatpush1.msra.mxu0 0.0
    %297 = vmatprep.subr.mxu0 0.0
    %298 = vmatpush1.msra.mxu0 0.0
    %299 = vmatprep.subr.mxu0 0.0
    %300 = vmatpush1.msra.mxu0 0.0
    %301 = vmatprep.subr.mxu0 0.0
    %302 = vmatpush1.msra.mxu0 0.0
    %303 = vmatprep.subr.mxu0 0.0
    %304 = vmatpush1.msra.mxu0 0.0
    %305 = vmatprep.subr.mxu0 0.0
    %306 = vmatpush1.msra.mxu0 0.0
    %307 = vmatprep.subr.mxu0 0.0
    %308 = vmatpush1.msra.mxu0 0.0
    %309 = vmatprep.subr.mxu0 0.0
    %310 = vmatpush1.msra.mxu0 0.0
    %311 = vmatprep.subr.mxu0 0.0
    %312 = vmatpush1.msra.mxu0 0.0
    %313 = vmatprep.subr.mxu0 0.0
    %314 = vmatpush1.msra.mxu0 0.0
    %315 = vmatprep.subr.mxu0 0.0
    %316 = vmatpush1.msra.mxu0 0.0
    %317 = vmatprep.subr.mxu0 0.0
    %318 = vmatpush1.msra.mxu0 0.0
    %319 = vmatprep.subr.mxu0 0.0
    %320 = vmatpush1.msra.mxu0 0.0
    %321 = vmatprep.subr.mxu0 0.0
    %322 = vmatpush1.msra.mxu0 0.0
    %323 = vmatprep.subr.mxu0 %v275
    %324 = vmatpush1.msra.mxu0 %v274
    %325 = vmatprep.subr.mxu0 0.0
    %326 = vmatpush2.msra.mxu0 0.0
    %327 = vmatprep.subr.mxu0 0.0
    %328 = vmatpush2.msra.mxu0 0.0
    %329 = vmatprep.subr.mxu0 0.0
    %330 = vmatpush2.msra.mxu0 0.0
    %331 = vmatprep.subr.mxu0 0.0
    %332 = vmatpush2.msra.mxu0 0.0
    %333 = vmatprep.subr.mxu0 0.0
    %334 = vmatpush2.msra.mxu0 0.0
    %335 = vmatprep.subr.mxu0 0.0
    %336 = vmatpush2.msra.mxu0 0.0
    %337 = vmatprep.subr.mxu0 0.0
    %338 = vmatpush2.msra.mxu0 0.0
    %339 = vmatprep.subr.mxu0 0.0
    %340 = vmatpush2.msra.mxu0 0.0
    %341 = vmatprep.subr.mxu0 0.0
    %342 = vmatpush2.msra.mxu0 0.0
    %343 = vmatprep.subr.mxu0 0.0
    %344 = vmatpush2.msra.mxu0 0.0
    %345 = vmatprep.subr.mxu0 0.0
    %346 = vmatpush2.msra.mxu0 0.0
    %347 = vmatprep.subr.mxu0 0.0
    %348 = vmatpush2.msra.mxu0 0.0
    %349 = vmatprep.subr.mxu0 0.0
    %350 = vmatpush2.msra.mxu0 0.0
    %351 = vmatprep.subr.mxu0 0.0
    %352 = vmatpush2.msra.mxu0 0.0
    %353 = vmatprep.subr.mxu0 0.0
    %354 = vmatpush2.msra.mxu0 0.0
    %355 = vmatprep.subr.mxu0 0.0
    %356 = vmatpush2.msra.mxu0 0.0
    %357 = vmatprep.mubr.f32.mxu0 0.0
    %358 = vmatmul.mubr.f32.gmra.mxu0 %v291
    %v359 = vpop.f32.mrf.mxu0
    %v360 = vadd.f32 0.0, %v359
    %v361 = vpop.f32.mrf.mxu0
    %v362 = vadd.f32 0.0, %v361
    %363 = vdwg.mxu0
    %364 = vmatprep.subr.mxu0 0.0
    %365 = vmatpush1.msra.mxu0 0.0
    %366 = vmatprep.subr.mxu0 0.0
    %367 = vmatpush1.msra.mxu0 0.0
    %368 = vmatprep.subr.mxu0 0.0
    %369 = vmatpush1.msra.mxu0 0.0
    %370 = vmatprep.subr.mxu0 0.0
    %371 = vmatpush1.msra.mxu0 0.0
    %372 = vmatprep.subr.mxu0 0.0
    %373 = vmatpush1.msra.mxu0 0.0
    %374 = vmatprep.subr.mxu0 0.0
    %375 = vmatpush1.msra.mxu0 0.0
    %376 = vmatprep.subr.mxu0 0.0
    %377 = vmatpush1.msra.mxu0 0.0
    %378 = vmatprep.subr.mxu0 0.0
    %379 = vmatpush1.msra.mxu0 0.0
    %380 = vmatprep.subr.mxu0 0.0
    %381 = vmatpush1.msra.mxu0 0.0
    %382 = vmatprep.subr.mxu0 0.0
    %383 = vmatpush1.msra.mxu0 0.0
    %384 = vmatprep.subr.mxu0 0.0
    %385 = vmatpush1.msra.mxu0 0.0
    %386 = vmatprep.subr.mxu0 0.0
    %387 = vmatpush1.msra.mxu0 0.0
    %388 = vmatprep.subr.mxu0 0.0
    %389 = vmatpush1.msra.mxu0 0.0
    %390 = vmatprep.subr.mxu0 0.0
    %391 = vmatpush1.msra.mxu0 0.0
    %392 = vmatprep.subr.mxu0 0.0
    %393 = vmatpush1.msra.mxu0 0.0
    %394 = vmatprep.subr.mxu0 %v287
    %395 = vmatpush1.msra.mxu0 %v286
    %396 = vmatprep.subr.mxu0 0.0
    %397 = vmatpush2.msra.mxu0 0.0
    %398 = vmatprep.subr.mxu0 0.0
    %399 = vmatpush2.msra.mxu0 0.0
    %400 = vmatprep.subr.mxu0 0.0
    %401 = vmatpush2.msra.mxu0 0.0
    %402 = vmatprep.subr.mxu0 0.0
    %403 = vmatpush2.msra.mxu0 0.0
    %404 = vmatprep.subr.mxu0 0.0
    %405 = vmatpush2.msra.mxu0 0.0
    %406 = vmatprep.subr.mxu0 0.0
    %407 = vmatpush2.msra.mxu0 0.0
    %408 = vmatprep.subr.mxu0 0.0
    %409 = vmatpush2.msra.mxu0 0.0
    %410 = vmatprep.subr.mxu0 0.0
    %411 = vmatpush2.msra.mxu0 0.0
    %412 = vmatprep.subr.mxu0 0.0
    %413 = vmatpush2.msra.mxu0 0.0
    %414 = vmatprep.subr.mxu0 0.0
    %415 = vmatpush2.msra.mxu0 0.0
    %416 = vmatprep.subr.mxu0 0.0
    %417 = vmatpush2.msra.mxu0 0.0
    %418 = vmatprep.subr.mxu0 0.0
    %419 = vmatpush2.msra.mxu0 0.0
    %420 = vmatprep.subr.mxu0 0.0
    %421 = vmatpush2.msra.mxu0 0.0
    %422 = vmatprep.subr.mxu0 0.0
    %423 = vmatpush2.msra.mxu0 0.0
    %424 = vmatprep.subr.mxu0 0.0
    %425 = vmatpush2.msra.mxu0 0.0
    %426 = vmatprep.subr.mxu0 0.0
    %427 = vmatpush2.msra.mxu0 0.0
    %428 = vmatprep.mubr.f32.mxu0 0.0
    %429 = vmatmul.mubr.f32.gmra.mxu0 %v291
    %v430 = vpop.f32.mrf.mxu0
    %v431 = vadd.f32 0.0, %v430
    %v432 = vpop.f32.mrf.mxu0
    %v433 = vadd.f32 0.0, %v432
    %434 = vdwg.mxu0
    %v435 = vld [vmem:[%s5] sm:$0xff]
    %v436 = vld [vmem:[%s6] sm:$0xff]
    %v437 = vadd.f32 %v360, %v362
    %438 = vadd.xlane.f32.xlu0 %v437
    %v439 = vpop.xlane.xlu0 %438
    %v440 = vmul.f32 %v439, %v223
    %v441 = vsub.f32 %v360, %v440
    %v442 = vsub.f32 %v362, %v440
    %v443 = vmul.f32 %v441, %v441
    %v444 = vmul.f32 %v442, %v442
    %v445 = vadd.f32 %v443, %v444
    %446 = vadd.xlane.f32.xlu0 %v445
    %v447 = vpop.xlane.xlu0 %446
    %v448 = vmul.f32 %v447, %v223
    %v449 = vadd.f32 %v448, 1e-05
    %v450 = vrsqrt.pop %v449
    %v451 = vmul.f32 %v448, %v450
    %v452 = vmul.f32 %v451, %v450
    %v453 = vadd.f32 %v452, 0.0
    %v454 = vadd.f32 %v431, %v433
    %455 = vadd.xlane.f32.xlu0 %v454
    %v456 = vpop.xlane.xlu0 %455
    %v457 = vmul.f32 %v456, %v223
    %v458 = vsub.f32 %v431, %v457
    %v459 = vsub.f32 %v433, %v457
    %v460 = vmul.f32 %v458, %v458
    %v461 = vmul.f32 %v459, %v459
    %v462 = vadd.f32 %v460, %v461
    %463 = vadd.xlane.f32.xlu0 %v462
    %v464 = vpop.xlane.xlu0 %463
    %v465 = vmul.f32 %v464, %v223
    %v466 = vadd.f32 %v465, 1e-05
    %v467 = vrsqrt.pop %v466
    %v468 = vmul.f32 %v465, %v467
    %v469 = vmul.f32 %v468, %v467
    %v470 = vadd.f32 %v453, %v469
    %v471 = vmul.f32 %v470, 0.5
    %v472 = vadd.f32 %v471, 1e-05
    %v473 = vrsqrt.pop %v472
    %v474 = vmul.f32 %v435, %v473
    %v475 = vmul.f32 %v450, %v474
    %477 = vset.pattern.permute.xlu0 0
    %478 = vperm.xlu0 %477, %v475
    %v479 = vpop.permute.xlu0 %478
    %v481 = vmul.f32 %v441, %v479
    %v482 = vmul.f32 %v442, %v479
    %484 = vset.pattern.permute.xlu0 0
    %485 = vperm.xlu0 %484, %v436
    %v486 = vpop.permute.xlu0 %485
    %v488 = vadd.f32 %v481, %v486
    %v489 = vadd.f32 %v482, %v486
    %v490 = vmul.f32 %v467, %v474
    %492 = vset.pattern.permute.xlu0 0
    %493 = vperm.xlu0 %492, %v490
    %v494 = vpop.permute.xlu0 %493
    %v496 = vmul.f32 %v458, %v494
    %v497 = vmul.f32 %v459, %v494
    %v498 = vadd.f32 %v496, %v486
    %v499 = vadd.f32 %v497, %v486
    %v500 = vadd.f32 %v488, %v214
    %v501 = vadd.f32 %v489, %v215
    %v502 = vadd.f32 %v498, %v216
    %v503 = vadd.f32 %v499, %v217
    %v504 = vmax.f32 %v500, 0.0
    %v505 = vmax.f32 %v501, 0.0
    %v506 = vmax.f32 %v502, 0.0
    %v507 = vmax.f32 %v503, 0.0
    %508 = vst [vmem:[#allocation2] sm:$0xff] %v504
    %509 = vst [vmem:[#allocation2 + $0x8] sm:$0xff] %v505
    %510 = vst [vmem:[#allocation2 + $0x10] sm:$0xff] %v506
    %511 = vst [vmem:[#allocation2 + $0x18] sm:$0xff] %v507
    // Predicated region
    $region34: #{tpu_custom_call.1} parent=1 // pred_check
      _
    $region35: #{tpu_custom_call.1} parent=1 // pred_check_branch
      %513 = sbr.rel (0) target = $region37
    $region36: #{tpu_custom_call.1} parent=1 // pred_region
      %s515 = ssub.s32 512, 512
      %516 = vsyncadd [#allocation3], %s515
      %s518 = sshll.u32 [#allocation2], 4
      %s519 = int_to_ptr.vmem [resolvable:$true] %s518
      %521 = dma.vmem_to_hbm [thread:$0]  %s519, 512, %s8, [#allocation3]
    $region37: #{tpu_custom_call.1} parent=1 // pred_fallthru
      _
    // Predicated region
    $region38: #{tpu_custom_call.1} parent=1 // pred_check
      _
    $region39: #{tpu_custom_call.1} parent=1 // pred_check_branch
      %523 = sbr.rel (0) target = $region41
    $region40: #{tpu_custom_call.1} parent=1 // pred_region
      %524 = dma.done [#allocation3], 512
    $region41: #{tpu_custom_call.1} parent=1 // pred_fallthru
      _
    %525 = vsyncpa [#allocation3], 1

</llo_original>
